<compile_context>
chip_gen: v6e
topology: v6e:2x2x1
jax: 0.10.0
libtpu: 0.0.40
codegen_flags: <defaults>
</compile_context>

<pallas_src>
import math

import jax
import jax.numpy as jnp
from jax.experimental import pallas as pl
from jax.experimental.pallas import tpu as pltpu


def _round_up(x, m):
    return (x + m - 1) // m * m


# ----------------------------- Pallas kernel -------------------------------
def _conv_gemm_kernel(w_ref, a_ref, b_ref, o_ref, acc_ref):
    """One (batch, n-tile, l-tile, k-tile) grid step.

    w_ref  : (tn, tk)     weight tile, (out_ch x K) layout
    a_ref  : (1, tk, tl)  im2col^T tile for one batch element
    b_ref  : (tn, 1)      bias column
    o_ref  : (1, tn, tl)  output tile (lane dim = spatial L -> dense stores)
    acc_ref: (tn, tl)     f32 accumulator, resident across the K grid axis
    """
    k = pl.program_id(3)

    @pl.when(k == 0)
    def _():
        acc_ref[...] = jnp.zeros_like(acc_ref)

    acc_ref[...] += jnp.dot(w_ref[...], a_ref[0],
                            preferred_element_type=jnp.float32)

    @pl.when(k == pl.num_programs(3) - 1)
    def _():
        o_ref[0] = (acc_ref[...] + b_ref[...]).astype(o_ref.dtype)


def _conv_gemm(w2, aT, bias2, *, tn, tl, tk):
    """w2: (Np, Kp), aT: (B, Kp, Lp), bias2: (Np, 1) -> (B, Np, Lp) f32."""
    Np, Kp = w2.shape
    B, _, Lp = aT.shape
    grid = (B, Np // tn, Lp // tl, Kp // tk)

    return pl.pallas_call(
        _conv_gemm_kernel,
        out_shape=jax.ShapeDtypeStruct((B, Np, Lp), jnp.float32),
        grid_spec=pltpu.PrefetchScalarGridSpec(
            num_scalar_prefetch=0,
            grid=grid,
            in_specs=[
                pl.BlockSpec((tn, tk), lambda b, n, l, k: (n, k)),     # W
                pl.BlockSpec((1, tk, tl), lambda b, n, l, k: (b, k, l)),  # A^T
                pl.BlockSpec((tn, 1), lambda b, n, l, k: (n, 0)),      # bias
            ],
            out_specs=pl.BlockSpec((1, tn, tl), lambda b, n, l, k: (b, n, l)),
            scratch_shapes=[pltpu.VMEM((tn, tl), jnp.float32)],
        ),
        compiler_params=pltpu.CompilerParams(
            dimension_semantics=("parallel", "parallel", "parallel",
                                 "arbitrary")),
        cost_estimate=pl.CostEstimate(
            flops=2 * B * Np * Lp * Kp,
            transcendentals=0,
            bytes_accessed=4 * (B * Kp * Lp + Np * Kp + Np + B * Np * Lp)),
    )(w2, aT, bias2)


# ----------------------------- tiling policy -------------------------------
def _choose_tiles(N, K, L):
    # Output-channel (sublane) tile: multiple of 8, capped at 256.
    if N <= 256:
        tn = _round_up(N, 8)
        Np = tn
    else:
        tn = 256
        Np = _round_up(N, tn)
    # Spatial (lane) tile: 128/256-wide unmasked stores, amortizes per-step
    # pipeline overhead.
    tl = 256 if L >= 256 else 128
    Lp = _round_up(L, tl)
    # Contraction tile: keep K as one full block when small (no padding, no
    # K loop), otherwise tile at 512 (multiple of 128 -> aligned weight-lane
    # loads) so the VMEM footprint stays bounded for large convs.
    if K <= 2048:
        tk, Kp = K, K
    else:
        tk = 512
        Kp = _round_up(K, tk)
    return tn, Np, tl, Lp, tk, Kp


# ------------------------------- im2col ------------------------------------
def _im2col_T(x, kh, kw, stride, padding, out_h, out_w, Kp, Lp):
    """Equivalent of torch.nn.functional.unfold(x, (kh, kw), stride, padding)
    in its native layout: returns (B, Kp, Lp) with K = C*kh*kw channel-major
    (index c*(kh*kw) + i*kw + j), zero-padded up to (Kp, Lp)."""
    B, C, H, W = x.shape
    xp = jnp.pad(x, ((0, 0), (0, 0), (padding, padding), (padding, padding)))
    patches = []
    for i in range(kh):
        for j in range(kw):
            patches.append(
                xp[:, :, i:i + stride * out_h:stride,
                         j:j + stride * out_w:stride])
    p = jnp.stack(patches, axis=2)                      # (B, C, kh*kw, oh, ow)
    p = p.reshape(B, C * kh * kw, out_h * out_w)        # (B, K, L)
    K = C * kh * kw
    L = out_h * out_w
    if Kp != K or Lp != L:
        p = jnp.pad(p, ((0, 0), (0, Kp - K), (0, Lp - L)))
    return p


# ----------------------------- Quant_Conv ----------------------------------
class QuantConv:
    """JAX/Pallas port of CPDtorch Quant_Conv (forward only)."""

    def __init__(self, in_channels, out_channels, kernel_size, stride=1,
                 padding=0, bias=True, exp=8, man=23, key=None):
        if (exp, man) != (8, 23):
            # TODO(synk): low-precision per-accumulation rounding of
            # quant_gemm is not reproduced; only the exact-f32 path is.
            raise NotImplementedError(
                "QuantConv Pallas port only supports exp=8, man=23 (float32)")
        self.in_channels = in_channels
        self.out_channels = out_channels
        self.kernel_size = (kernel_size, kernel_size)
        self.stride = stride
        self.padding = padding
        self.exp = exp
        self.man = man

        key = jax.random.PRNGKey(0) if key is None else key
        kw_, kb_ = jax.random.split(key)
        fan_in = in_channels * kernel_size * kernel_size
        # kaiming_uniform_(a=sqrt(5)) -> U(-1/sqrt(fan_in), 1/sqrt(fan_in))
        bound = 1.0 / math.sqrt(fan_in)
        self.weight = jax.random.uniform(
            kw_, (out_channels, in_channels, kernel_size, kernel_size),
            minval=-bound, maxval=bound, dtype=jnp.float32)
        if bias:
            self.bias = jax.random.uniform(
                kb_, (out_channels,), minval=-bound, maxval=bound,
                dtype=jnp.float32)
        else:
            self.bias = jnp.zeros((out_channels,), jnp.float32)

    def __call__(self, x):
        B, C, H, W = x.shape
        N, Cw, kh, kw = self.weight.shape
        out_h = (H - kh + 2 * self.padding) // self.stride + 1
        out_w = (W - kw + 2 * self.padding) // self.stride + 1
        L = out_h * out_w
        K = Cw * kh * kw

        tn, Np, tl, Lp, tk, Kp = _choose_tiles(N, K, L)

        aT = _im2col_T(x, kh, kw, self.stride, self.padding,
                       out_h, out_w, Kp, Lp)             # (B, Kp, Lp)
        w2 = self.weight.reshape(N, K)                   # (N, K)
        bias = self.bias
        if Np != N or Kp != K:
            w2 = jnp.pad(w2, ((0, Np - N), (0, Kp - K)))
        if Np != N:
            bias = jnp.pad(bias, (0, Np - N))
        bias2 = bias.reshape(Np, 1)

        out = _conv_gemm(w2, aT, bias2, tn=tn, tl=tl, tk=tk)  # (B, Np, Lp)
        out = out[:, :N, :L]                             # already NCHW-ordered
        return out.reshape(B, N, out_h, out_w)


# ------------------------------- demo --------------------------------------
if __name__ == "__main__":
    key = jax.random.PRNGKey(0)
    k_x, k_p = jax.random.split(key)

    B, Cin, H, W = 2, 4, 16, 16
    Cout, ksize, stride, padding = 8, 3, 1, 1

    x = jax.random.normal(k_x, (B, Cin, H, W), dtype=jnp.float32)
    conv = QuantConv(Cin, Cout, ksize, stride=stride, padding=padding,
                     bias=True, exp=8, man=23, key=k_p)

    y = conv(x)
    y = jax.block_until_ready(y)

    # Reference (plain XLA conv) to verify semantics.
    ref = jax.lax.conv_general_dilated(
        x, conv.weight, window_strides=(stride, stride),
        padding=[(padding, padding), (padding, padding)],
        dimension_numbers=("NCHW", "OIHW", "NCHW"))
    ref = ref + conv.bias.reshape(1, Cout, 1, 1)

    assert y.shape == (B, Cout, H, W)
    assert jnp.allclose(y, ref, atol=1e-4, rtol=1e-4)
    print("KERNEL_OK")
</pallas_src>

<mosaic_0001>
module attributes {stable_mosaic.version = 11 : i64} {
  func.func @_conv_gemm_kernel(%arg0: i32, %arg1: i32, %arg2: i32, %arg3: i32, %arg4: memref<8x36xf32, #tpu.memory_space<vmem>>, %arg5: memref<1x36x256xf32, #tpu.memory_space<vmem>>, %arg6: memref<8x1xf32, #tpu.memory_space<vmem>>, %arg7: memref<1x8x256xf32, #tpu.memory_space<vmem>>, %arg8: memref<8x256xf32, #tpu.memory_space<vmem>>) attributes {dimension_semantics = [#tpu.dimension_semantics<parallel>, #tpu.dimension_semantics<parallel>, #tpu.dimension_semantics<parallel>, #tpu.dimension_semantics<arbitrary>], iteration_bounds = array<i64: 2, 1, 1, 1>, scalar_prefetch = 0 : i64, scratch_operands = 1 : i64, tpu.core_type = #tpu.core_type<tc>, window_params = [{transform_indices = @transform_0, window_bounds = array<i64: 8, 36>}, {transform_indices = @transform_1, window_bounds = array<i64: 1, 36, 256>}, {transform_indices = @transform_2, window_bounds = array<i64: 8, 1>}, {transform_indices = @transform_3, window_bounds = array<i64: 1, 8, 256>}]} {
    %c0_i32 = arith.constant 0 : i32
    %0 = arith.cmpi eq, %arg3, %c0_i32 : i32
    %1 = arith.extui %0 : i1 to i32
    %c0_i32_0 = arith.constant 0 : i32
    %2 = arith.cmpi ne, %1, %c0_i32_0 : i32
    scf.if %2 {
      %cst_11 = arith.constant 0.000000e+00 : f32
      %13 = vector.broadcast %cst_11 : f32 to vector<8x256xf32>
      %c0_12 = arith.constant 0 : index
      %c0_13 = arith.constant 0 : index
      %14 = vector.load %arg8[%c0_12, %c0_13] : memref<8x256xf32, #tpu.memory_space<vmem>>, vector<8x256xf32>
      tpu.vector_store %arg8[%c0_12, %c0_13], %13 {strides = array<i32>} : memref<8x256xf32, #tpu.memory_space<vmem>>, vector<8x256xf32>,
    } else {
    }
    %c0 = arith.constant 0 : index
    %c0_1 = arith.constant 0 : index
    %3 = vector.load %arg8[%c0, %c0_1] : memref<8x256xf32, #tpu.memory_space<vmem>>, vector<8x256xf32>
    %c0_2 = arith.constant 0 : index
    %c0_3 = arith.constant 0 : index
    %4 = vector.load %arg4[%c0_2, %c0_3] : memref<8x36xf32, #tpu.memory_space<vmem>>, vector<8x36xf32>
    %c0_4 = arith.constant 0 : index
    %c0_5 = arith.constant 0 : index
    %c0_6 = arith.constant 0 : index
    %5 = vector.load %arg5[%c0_4, %c0_5, %c0_6] : memref<1x36x256xf32, #tpu.memory_space<vmem>>, vector<1x36x256xf32>
    %6 = vector.shape_cast %5 : vector<1x36x256xf32> to vector<36x256xf32>
    %cst = arith.constant dense<0.000000e+00> : vector<8x256xf32>
    %7 = tpu.matmul %4, %6, %cst {dimension_numbers = #tpu.dot_dimension_numbers<[1], [0], [0], [1], [0, 0, 1, 1], [], []>} : vector<8x36xf32>, vector<36x256xf32>, vector<8x256xf32> -> vector<8x256xf32>
    %8 = arith.addf %3, %7 : vector<8x256xf32>
    %c0_7 = arith.constant 0 : index
    %c0_8 = arith.constant 0 : index
    %9 = vector.load %arg8[%c0_7, %c0_8] : memref<8x256xf32, #tpu.memory_space<vmem>>, vector<8x256xf32>
    tpu.vector_store %arg8[%c0_7, %c0_8], %8 {strides = array<i32>} : memref<8x256xf32, #tpu.memory_space<vmem>>, vector<8x256xf32>,
    %c0_i32_9 = arith.constant 0 : i32
    %10 = arith.cmpi eq, %arg3, %c0_i32_9 : i32
    %11 = arith.extui %10 : i1 to i32
    %c0_i32_10 = arith.constant 0 : i32
    %12 = arith.cmpi ne, %11, %c0_i32_10 : i32
    scf.if %12 {
      %c0_11 = arith.constant 0 : index
      %c0_12 = arith.constant 0 : index
      %13 = vector.load %arg8[%c0_11, %c0_12] : memref<8x256xf32, #tpu.memory_space<vmem>>, vector<8x256xf32>
      %c0_13 = arith.constant 0 : index
      %c0_14 = arith.constant 0 : index
      %14 = vector.load %arg6[%c0_13, %c0_14] : memref<8x1xf32, #tpu.memory_space<vmem>>, vector<8x1xf32>
      %15 = vector.broadcast %14 : vector<8x1xf32> to vector<8x256xf32>
      %16 = arith.addf %13, %15 : vector<8x256xf32>
      %c0_15 = arith.constant 0 : index
      %c0_16 = arith.constant 0 : index
      %c0_17 = arith.constant 0 : index
      %17 = vector.load %arg7[%c0_15, %c0_16, %c0_17] : memref<1x8x256xf32, #tpu.memory_space<vmem>>, vector<1x8x256xf32>
      %18 = vector.shape_cast %17 : vector<1x8x256xf32> to vector<8x256xf32>
      %19 = vector.shape_cast %16 : vector<8x256xf32> to vector<1x8x256xf32>
      tpu.vector_store %arg7[%c0_15, %c0_16, %c0_17], %19 {strides = array<i32>} : memref<1x8x256xf32, #tpu.memory_space<vmem>>, vector<1x8x256xf32>,
    } else {
    }
    return
  }
  func.func @transform_0(%arg0: i32, %arg1: i32, %arg2: i32, %arg3: i32) -> (i32, i32) {
    %c0_i32 = arith.constant 0 : i32
    return %arg1, %arg3 : i32, i32
  }
  func.func @transform_1(%arg0: i32, %arg1: i32, %arg2: i32, %arg3: i32) -> (i32, i32, i32) {
    %c0_i32 = arith.constant 0 : i32
    return %arg0, %arg3, %arg2 : i32, i32, i32
  }
  func.func @transform_2(%arg0: i32, %arg1: i32, %arg2: i32, %arg3: i32) -> (i32, i32) {
    %c0_i32 = arith.constant 0 : i32
    %c0_i32_0 = arith.constant 0 : i32
    return %arg1, %c0_i32 : i32, i32
  }
  func.func @transform_3(%arg0: i32, %arg1: i32, %arg2: i32, %arg3: i32) -> (i32, i32, i32) {
    %c0_i32 = arith.constant 0 : i32
    return %arg0, %arg1, %arg2 : i32, i32, i32
  }
}

</mosaic_0001>

<llo_original>
// kernel: tpu_custom_call.1
$region0: #{tpu_custom_call.1}
  #allocation0 [shape = 'u32[]', space=smem, size = 0x4, offset = 0x4, fixed_abs, tag = 'smem constant byte address 0x4 - core index']
  #allocation1 [shape = 'u32[144,128]{1,0:T(1,128)}', space=vmem, size = 0x12000, scoped, tag = 'internal scratch']
  #allocation2 [shape = 'f32[8,256]{1,0:T(8,128)}', space=vmem, size = 0x2000, scoped, tag = 'scratch operand']
  %s0 = inlined_call_operand.vmem [shape: f32[8,36], index: 0, kind: input, shape index: {}]
  %s1 = inlined_call_operand.vmem [shape: f32[2,36,256], index: 1, kind: input, shape index: {}]
  %s2 = inlined_call_operand.vmem [shape: f32[8,1], index: 2, kind: input, shape index: {}]
  %s3 = inlined_call_operand.hbm [shape: f32[2,8,256], index: 3, kind: output, shape index: {}]
  %s4 = sld [smem:[#allocation0]]
  $region53: #{tpu_custom_call.1} parent=0
    _
  %s6 = ssub.s32 1, %s4
  %s7 = scalar_select 0, %s6, %s4
  $region1: #{tpu_custom_call.1} parent=0
    #allocation3 [shape = 'u8[16384]{0}', space=vmem, size = 0x4000, scoped, tag = 'output window, operand 0']
    #allocation4 [shape = 's32[2]{0}', space=sflag, size = 0x8, scoped, tag = 'scoped memory for tpu_custom_call.1']
    %8 = vsyncpa [#allocation4], 0
    %s9 = scalar_lea.sflag [#allocation4], 1
    %10 = vsyncpa %s9, 0
    loop: start=0, step=1, limit=4
    $region2: #{tpu_custom_call.1} parent=1 // loop_pre_header
      _
    $region3: #{tpu_custom_call.1} parent=1 // loop_header
      %s12 = sphi 0, %s16
      %p13 = scmp.ge.s32.totalorder %s12, 4
      %s19 = sphi 0, %s45
      %s20 = sphi 0, %s41
      %s21 = sphi 0, %s37
      %s22 = sphi 0, %s33
      %s23 = sphi 0, %s19
      %s24 = sphi 0, %s20
      %s25 = sphi 0, %s21
      %s26 = sphi 0, %s22
      %s27 = sphi 0, %s23
      %s28 = sphi 0, %s24
      %s29 = sphi 0, %s25
      %s30 = sphi 0, %s26
      %s50 = sphi 0, %s52
      %s53 = sphi 0, %s50
      %s54 = sphi 0, %s53
      %s70 = sphi 0, %s54
      %s80 = sphi 0, %s82
      %s83 = sphi 0, %s80
      %s84 = sphi 0, %s83
      %s100 = sphi 0, %s84
      %s106 = sphi 0, %s108
      %s109 = sphi 0, %s106
      %s110 = sphi 0, %s109
      %s126 = sphi 0, %s110
      %s136 = sphi 0, %s138
      %s139 = sphi 0, %s136
      %s140 = sphi 0, %s139
      %s156 = sphi 0, %s140
    $region4: #{tpu_custom_call.1} parent=1 // loop_header_branch
      %15 = sbr.rel (%p13) target = $region8
    $region5: #{tpu_custom_call.1} parent=1 // loop_body
      %s17 = ssub.s32 %s12, 1
      %s18 = ssub.s32 %s12, 2
      %s31 = sadd.s32 1, %s22
      %p32 = scmp.ge.s32.totalorder %s31, 1
      %s33 = scalar_select %p32, 0, %s31
      %s34 = sadd.s32 1, %s21
      %s35 = scalar_select %p32, %s34, %s21
      %p36 = scmp.ge.s32.totalorder %s35, 1
      %s37 = scalar_select %p36, 0, %s35
      %s38 = sadd.s32 1, %s20
      %s39 = scalar_select %p36, %s38, %s20
      %p40 = scmp.ge.s32.totalorder %s39, 1
      %s41 = scalar_select %p40, 0, %s39
      %s42 = sadd.s32 1, %s19
      %s43 = scalar_select %p40, %s42, %s19
      %p44 = scmp.ge.s32.totalorder %s43, 2
      %s45 = scalar_select %p44, 0, %s43
      %s46 = ssub.s32 %s20, %s41
      %s47 = ssub.s32 %s22, %s33
      %s48 = sor.u32 %s46, %s47
      %p49 = scmp.eq.s32.totalorder %s48, 0
      %s51 = sadd.s32 %s50, 1
      %s52 = scalar_select %p49, %s50, %s51
      %p55 = pneg %p49
      %p56 = scmp.eq.s32.totalorder %s12, 1
      %p57 = por %p55, %p56
      %p58 = scmp.ne.s32.totalorder %s50, %s53
      %p59 = scmp.eq.s32.totalorder %s12, 0
      %p60 = por %p58, %p59
      %p61 = scmp.ne.s32.totalorder %s50, %s53
      %p62 = scmp.eq.s32.totalorder %s17, 1
      %p63 = por %p61, %p62
      %p64 = scmp.ne.s32.totalorder %s53, %s54
      %p65 = scmp.eq.s32.totalorder %s17, 0
      %p66 = por %p64, %p65
      %p67 = scmp.ne.s32.totalorder %s53, %s54
      %p68 = scmp.eq.s32.totalorder %s18, 1
      %p69 = por %p67, %p68
      %p71 = scmp.ne.s32.totalorder %s54, %s70
      %p72 = scmp.eq.s32.totalorder %s18, 0
      %p73 = por %p71, %p72
      %s74 = ssub.s32 %s19, %s45
      %s75 = ssub.s32 %s22, %s33
      %s76 = sor.u32 %s74, %s75
      %s77 = ssub.s32 %s21, %s37
      %s78 = sor.u32 %s76, %s77
      %p79 = scmp.eq.s32.totalorder %s78, 0
      %s81 = sadd.s32 %s80, 1
      %s82 = scalar_select %p79, %s80, %s81
      %p85 = pneg %p79
      %p86 = scmp.eq.s32.totalorder %s12, 1
      %p87 = por %p85, %p86
      %p88 = scmp.ne.s32.totalorder %s80, %s83
      %p89 = scmp.eq.s32.totalorder %s12, 0
      %p90 = por %p88, %p89
      %p91 = scmp.ne.s32.totalorder %s80, %s83
      %p92 = scmp.eq.s32.totalorder %s17, 1
      %p93 = por %p91, %p92
      %p94 = scmp.ne.s32.totalorder %s83, %s84
      %p95 = scmp.eq.s32.totalorder %s17, 0
      %p96 = por %p94, %p95
      %p97 = scmp.ne.s32.totalorder %s83, %s84
      %p98 = scmp.eq.s32.totalorder %s18, 1
      %p99 = por %p97, %p98
      %p101 = scmp.ne.s32.totalorder %s84, %s100
      %p102 = scmp.eq.s32.totalorder %s18, 0
      %p103 = por %p101, %p102
      %s104 = ssub.s32 %s20, %s41
      %p105 = scmp.eq.s32.totalorder %s104, 0
      %s107 = sadd.s32 %s106, 1
      %s108 = scalar_select %p105, %s106, %s107
      %p111 = pneg %p105
      %p112 = scmp.eq.s32.totalorder %s12, 1
      %p113 = por %p111, %p112
      %p114 = scmp.ne.s32.totalorder %s106, %s109
      %p115 = scmp.eq.s32.totalorder %s12, 0
      %p116 = por %p114, %p115
      %p117 = scmp.ne.s32.totalorder %s106, %s109
      %p118 = scmp.eq.s32.totalorder %s17, 1
      %p119 = por %p117, %p118
      %p120 = scmp.ne.s32.totalorder %s109, %s110
      %p121 = scmp.eq.s32.totalorder %s17, 0
      %p122 = por %p120, %p121
      %p123 = scmp.ne.s32.totalorder %s109, %s110
      %p124 = scmp.eq.s32.totalorder %s18, 1
      %p125 = por %p123, %p124
      %p127 = scmp.ne.s32.totalorder %s110, %s126
      %p128 = scmp.eq.s32.totalorder %s18, 0
      %p129 = por %p127, %p128
      %s130 = ssub.s32 %s19, %s45
      %s131 = ssub.s32 %s20, %s41
      %s132 = sor.u32 %s130, %s131
      %s133 = ssub.s32 %s21, %s37
      %s134 = sor.u32 %s132, %s133
      %p135 = scmp.eq.s32.totalorder %s134, 0
      %s137 = sadd.s32 %s136, 1
      %s138 = scalar_select %p135, %s136, %s137
      %p141 = pneg %p135
      %p142 = scmp.eq.s32.totalorder %s12, 1
      %p143 = por %p141, %p142
      %p144 = scmp.ne.s32.totalorder %s136, %s139
      %p145 = scmp.eq.s32.totalorder %s12, 0
      %p146 = por %p144, %p145
      %p147 = scmp.ne.s32.totalorder %s136, %s139
      %p148 = scmp.eq.s32.totalorder %s17, 1
      %p149 = por %p147, %p148
      %p150 = scmp.ne.s32.totalorder %s139, %s140
      %p151 = scmp.eq.s32.totalorder %s17, 0
      %p152 = por %p150, %p151
      %p153 = scmp.ne.s32.totalorder %s139, %s140
      %p154 = scmp.eq.s32.totalorder %s18, 1
      %p155 = por %p153, %p154
      %p157 = scmp.ne.s32.totalorder %s140, %s156
      %p158 = scmp.eq.s32.totalorder %s18, 0
      %p159 = por %p157, %p158
      %p160 = scmp.le.s32.totalorder 1, %s12
      %p161 = scmp.lt.s32.totalorder %s12, 3
      %p162 = pnand %p160, %p161
      %p163 = pneg %p162
      // Predicated region
      $region9: #{tpu_custom_call.1} parent=5 // pred_check
        _
      $region10: #{tpu_custom_call.1} parent=5 // pred_check_branch
        %165 = sbr.rel (%p162) target = $region12
      $region11: #{tpu_custom_call.1} parent=5 // pred_region
        %s166 = ssub.s32 %s12, 1
        // Predicated region
        $region13: #{tpu_custom_call.1} parent=11 // pred_check
          %p167 = pneg %p66
        $region14: #{tpu_custom_call.1} parent=11 // pred_check_branch
          %169 = sbr.rel (%p167) target = $region16
        $region15: #{tpu_custom_call.1} parent=11 // pred_region
          %p170 = scmp.lt.s32.totalorder %s24, 0
          %s171 = scalar_select %p170, %s24, 0
          %p172 = scmp.lt.s32.totalorder %s26, 0
          %s173 = scalar_select %p172, %s26, 0
          %s174 = sadd.s32 %s173, %s171
          %s175 = smul.addr %s174, 8
          %s176 = scalar_lea.vmem %s0, %s175
        $region16: #{tpu_custom_call.1} parent=11 // pred_fallthru
          _
        // Predicated region
        $region17: #{tpu_custom_call.1} parent=11 // pred_check
          %p177 = pneg %p122
        $region18: #{tpu_custom_call.1} parent=11 // pred_check_branch
          %179 = sbr.rel (%p177) target = $region20
        $region19: #{tpu_custom_call.1} parent=11 // pred_region
          %p180 = scmp.lt.s32.totalorder %s24, 0
          %s181 = scalar_select %p180, %s24, 0
          %s182 = smul.addr %s181, 8
          %s183 = scalar_lea.vmem %s2, %s182
        $region20: #{tpu_custom_call.1} parent=11 // pred_fallthru
          _
      $region12: #{tpu_custom_call.1} parent=5 // pred_fallthru
        _
      %p184 = scmp.lt.s32.totalorder %s12, 2
      // Predicated region
      $region21: #{tpu_custom_call.1} parent=5 // pred_check
        %p185 = pneg %p184
      $region22: #{tpu_custom_call.1} parent=5 // pred_check_branch
        %187 = sbr.rel (%p185) target = $region24
      $region23: #{tpu_custom_call.1} parent=5 // pred_region
        // Predicated region
        $region25: #{tpu_custom_call.1} parent=23 // pred_check
          %p188 = pneg %p90
        $region26: #{tpu_custom_call.1} parent=23 // pred_check_branch
          %190 = sbr.rel (%p188) target = $region28
        $region27: #{tpu_custom_call.1} parent=23 // pred_region
          %s191 = smul.u32 5, %s22
          %s192 = smul.u32 2, %s21
          %p193 = scmp.lt.s32.totalorder %s19, 1
          %s194 = scalar_select %p193, %s19, 1
          %p195 = scmp.lt.s32.totalorder %s191, 4
          %s196 = scalar_select %p195, %s191, 4
          %p197 = scmp.lt.s32.totalorder %s192, 1
          %s198 = scalar_select %p197, %s192, 1
          %s199 = smul.addr %s196, 2
          %s200 = sadd.s32 %s198, %s199
          %s201 = smul.addr %s194, 10
          %s202 = sadd.s32 %s200, %s201
          %s203 = smul.addr %s202, 8
          %s204 = scalar_lea.vmem %s1, %s203
          %s205 = smul.u32 5, %s22
          %s206 = smul.u32 2, %s21
        $region28: #{tpu_custom_call.1} parent=23 // pred_fallthru
          _
      $region24: #{tpu_custom_call.1} parent=5 // pred_fallthru
        _
      %p207 = scmp.le.s32.totalorder 1, %s12
      %p208 = scmp.lt.s32.totalorder %s12, 3
      %p209 = pnand %p207, %p208
      %p210 = pneg %p209
      // Predicated region
      $region29: #{tpu_custom_call.1} parent=5 // pred_check
        _
      $region30: #{tpu_custom_call.1} parent=5 // pred_check_branch
        %212 = sbr.rel (%p209) target = $region32
      $region31: #{tpu_custom_call.1} parent=5 // pred_region
        %s213 = ssub.s32 %s12, 1
        %p214 = scmp.lt.s32.totalorder %s24, 0
        %s215 = scalar_select %p214, %s24, 0
        %p216 = scmp.lt.s32.totalorder %s26, 0
        %s217 = scalar_select %p216, %s26, 0
        %s218 = sadd.s32 %s217, %s215
        %s219 = smul.addr %s218, 8
        %s220 = scalar_lea.vmem %s0, %s219
        %p221 = pneg %p66
        %p222 = pneg %p63
        %s223 = smul.u32 5, %s26
        %s224 = smul.u32 2, %s25
        %p225 = scmp.lt.s32.totalorder %s23, 1
        %s226 = scalar_select %p225, %s23, 1
        %p227 = scmp.lt.s32.totalorder %s223, 4
        %s228 = scalar_select %p227, %s223, 4
        %p229 = scmp.lt.s32.totalorder %s224, 1
        %s230 = scalar_select %p229, %s224, 1
        %s231 = smul.addr %s228, 2
        %s232 = sadd.s32 %s230, %s231
        %s233 = smul.addr %s226, 10
        %s234 = sadd.s32 %s232, %s233
        %s235 = smul.addr %s234, 8
        %s236 = scalar_lea.vmem %s1, %s235
        %p237 = pneg %p96
        %p238 = pneg %p93
        %p239 = scmp.lt.s32.totalorder %s24, 0
        %s240 = scalar_select %p239, %s24, 0
        %s241 = smul.addr %s240, 8
        %s242 = scalar_lea.vmem %s2, %s241
        %p243 = pneg %p122
        %p244 = pneg %p119
        %p245 = pneg %p152
        %p246 = pneg %p149
        %s247 = sand.u32 %s139, 1
        %s248 = scalar_lea.sflag [#allocation4], %s247
        %s249 = sand.u32 %s139, 1
        %s250 = smul.addr %s249, 16
        %s251 = scalar_lea.vmem [#allocation3], %s250
        %p252 = scmp.lt.s32.totalorder %s24, 0
        %s253 = scalar_select %p252, %s24, 0
        %p254 = scmp.lt.s32.totalorder %s26, 0
        %s255 = scalar_select %p254, %s26, 0
        %s256 = sadd.s32 %s255, %s253
        %s257 = smul.addr %s256, 8
        %s258 = scalar_lea.vmem %s0, %s257
        %s259 = smul.u32 5, %s26
        %s260 = smul.u32 2, %s25
        %p261 = scmp.lt.s32.totalorder %s23, 1
        %s262 = scalar_select %p261, %s23, 1
        %p263 = scmp.lt.s32.totalorder %s259, 4
        %s264 = scalar_select %p263, %s259, 4
        %p265 = scmp.lt.s32.totalorder %s260, 1
        %s266 = scalar_select %p265, %s260, 1
        %s267 = smul.addr %s264, 2
        %s268 = sadd.s32 %s266, %s267
        %s269 = smul.addr %s262, 10
        %s270 = sadd.s32 %s268, %s269
        %s271 = smul.addr %s270, 8
        %s272 = scalar_lea.vmem %s1, %s271
        %s273 = smul.u32 5, %s26
        %s274 = smul.u32 2, %s25
        %p275 = scmp.lt.s32.totalorder %s24, 0
        %s276 = scalar_select %p275, %s24, 0
        %s277 = smul.addr %s276, 8
        %s278 = scalar_lea.vmem %s2, %s277
        %s279 = smul.u32 2, %s25
        %p280 = scmp.eq.s32.totalorder %s26, 0
        // Predicated region
        $region33: #{tpu_custom_call.1} parent=31 // pred_check
          %p281 = pneg %p280
        $region34: #{tpu_custom_call.1} parent=31 // pred_check_branch
          %283 = sbr.rel (%p281) target = $region36
        $region35: #{tpu_custom_call.1} parent=31 // pred_region
          %284 = vst [vmem:[#allocation2] sm:$0xff] 0.0
          %285 = vst [vmem:[#allocation2 + $0x8] sm:$0xff] 0.0
        $region36: #{tpu_custom_call.1} parent=31 // pred_fallthru
          _
        %v286 = vld [vmem:[#allocation2] sm:$0xff]
        %v287 = vld [vmem:[#allocation2 + $0x8] sm:$0xff]
        %v288 = vld [vmem:[%s258] sm:$0xff]
        %v289 = vld [vmem:[%s272] sm:$0xff]
        %v290 = vld [vmem:[%s272 + $0x8] sm:$0xff]
        %v291 = vld [vmem:[%s272 + $0x10] sm:$0xff]
        %v292 = vld [vmem:[%s272 + $0x18] sm:$0xff]
        %v293 = vld [vmem:[%s272 + $0x20] sm:$0xff]
        %v294 = vld [vmem:[%s272 + $0x28] sm:$0xff]
        %v295 = vld [vmem:[%s272 + $0x30] sm:$0xff]
        %v296 = vld [vmem:[%s272 + $0x38] sm:$0xff]
        %v297 = vld [vmem:[%s272 + $0x40] sm:$0xf]
        %v298 = vld [vmem:[%s272 + $0x48] sm:$0xf]
        %vm299 = vcmask 293888
        %v301 = vsel %vm299, %v288, 0
        %vm303 = vcmask 1043456
        %v305 = vsel %vm303, %v297, 0
        %v308 = vsel %vm303, %v298, 0
        %310 = vmatprep.subr.mxu0 0.0
        %311 = vmatpush1.msra.mxu0 0.0
        %312 = vmatprep.subr.mxu0 0.0
        %313 = vmatpush1.msra.mxu0 0.0
        %314 = vmatprep.subr.mxu0 0.0
        %315 = vmatpush1.msra.mxu0 0.0
        %316 = vmatprep.subr.mxu0 0.0
        %317 = vmatpush1.msra.mxu0 0.0
        %318 = vmatprep.subr.mxu0 0.0
        %319 = vmatpush1.msra.mxu0 0.0
        %320 = vmatprep.subr.mxu0 0.0
        %321 = vmatpush1.msra.mxu0 0.0
        %322 = vmatprep.subr.mxu0 0.0
        %323 = vmatpush1.msra.mxu0 0.0
        %324 = vmatprep.subr.mxu0 0.0
        %325 = vmatpush1.msra.mxu0 0.0
        %326 = vmatprep.subr.mxu0 0.0
        %327 = vmatpush1.msra.mxu0 0.0
        %328 = vmatprep.subr.mxu0 0.0
        %329 = vmatpush1.msra.mxu0 0.0
        %330 = vmatprep.subr.mxu0 0.0
        %331 = vmatpush1.msra.mxu0 0.0
        %332 = vmatprep.subr.mxu0 %v308
        %333 = vmatpush1.msra.mxu0 %v305
        %334 = vmatprep.subr.mxu0 %v296
        %335 = vmatpush1.msra.mxu0 %v295
        %336 = vmatprep.subr.mxu0 %v294
        %337 = vmatpush1.msra.mxu0 %v293
        %338 = vmatprep.subr.mxu0 %v292
        %339 = vmatpush1.msra.mxu0 %v291
        %340 = vmatprep.subr.mxu0 %v290
        %341 = vmatpush1.msra.mxu0 %v289
        %342 = vmatprep.subr.mxu0 0.0
        %343 = vmatpush2.msra.mxu0 0.0
        %344 = vmatprep.subr.mxu0 0.0
        %345 = vmatpush2.msra.mxu0 0.0
        %346 = vmatprep.subr.mxu0 0.0
        %347 = vmatpush2.msra.mxu0 0.0
        %348 = vmatprep.subr.mxu0 0.0
        %349 = vmatpush2.msra.mxu0 0.0
        %350 = vmatprep.subr.mxu0 0.0
        %351 = vmatpush2.msra.mxu0 0.0
        %352 = vmatprep.subr.mxu0 0.0
        %353 = vmatpush2.msra.mxu0 0.0
        %354 = vmatprep.subr.mxu0 0.0
        %355 = vmatpush2.msra.mxu0 0.0
        %356 = vmatprep.subr.mxu0 0.0
        %357 = vmatpush2.msra.mxu0 0.0
        %358 = vmatprep.subr.mxu0 0.0
        %359 = vmatpush2.msra.mxu0 0.0
        %360 = vmatprep.subr.mxu0 0.0
        %361 = vmatpush2.msra.mxu0 0.0
        %362 = vmatprep.subr.mxu0 0.0
        %363 = vmatpush2.msra.mxu0 0.0
        %364 = vmatprep.subr.mxu0 0.0
        %365 = vmatpush2.msra.mxu0 0.0
        %366 = vmatprep.subr.mxu0 0.0
        %367 = vmatpush2.msra.mxu0 0.0
        %368 = vmatprep.subr.mxu0 0.0
        %369 = vmatpush2.msra.mxu0 0.0
        %370 = vmatprep.subr.mxu0 0.0
        %371 = vmatpush2.msra.mxu0 0.0
        %372 = vmatprep.subr.mxu0 0.0
        %373 = vmatpush2.msra.mxu0 0.0
        %374 = vmatprep.mubr.f32.mxu0 0.0
        %375 = vmatmul.mubr.f32.gmra.mxu0 %v301
        %v376 = vpop.f32.mrf.mxu0
        %v377 = vadd.f32 0.0, %v376
        %v378 = vpop.f32.mrf.mxu0
        %v379 = vadd.f32 0.0, %v378
        %380 = vdwg.mxu0
        %v381 = vadd.f32 %v286, %v377
        %v382 = vadd.f32 %v287, %v379
        %383 = vst [vmem:[#allocation2] sm:$0xff] %v381
        %384 = vst [vmem:[#allocation2 + $0x8] sm:$0xff] %v382
        // Predicated region
        $region37: #{tpu_custom_call.1} parent=31 // pred_check
          %p385 = pneg %p280
        $region38: #{tpu_custom_call.1} parent=31 // pred_check_branch
          %387 = sbr.rel (%p385) target = $region40
        $region39: #{tpu_custom_call.1} parent=31 // pred_region
          %v388 = vld [vmem:[#allocation2] sm:$0xff]
          %v389 = vld [vmem:[#allocation2 + $0x8] sm:$0xff]
          %v390 = vld [vmem:[%s278] sm:$0xff]
          %392 = vset.pattern.permute.xlu0 0
          %393 = vperm.xlu0 %392, %v390
          %v394 = vpop.permute.xlu0 %393
          %v396 = vadd.f32 %v388, %v394
          %v397 = vadd.f32 %v389, %v394
          %398 = vst [vmem:[%s251] sm:$0xff] %v396
          %399 = vst [vmem:[%s251 + $0x8] sm:$0xff] %v397
        $region40: #{tpu_custom_call.1} parent=31 // pred_fallthru
          _
        %s400 = sand.u32 %s139, 1
        %s401 = scalar_lea.sflag [#allocation4], %s400
        %s402 = sand.u32 %s139, 1
        %s403 = smul.addr %s402, 16
        %s404 = scalar_lea.vmem [#allocation3], %s403
        // Predicated region
        $region41: #{tpu_custom_call.1} parent=31 // pred_check
          %p405 = pneg %p149
        $region42: #{tpu_custom_call.1} parent=31 // pred_check_branch
          %407 = sbr.rel (%p405) target = $region44
        $region43: #{tpu_custom_call.1} parent=31 // pred_region
          %s408 = smul.u32 2, %s25
          %s410 = ssub.s32 256, 256
          %411 = vsyncadd %s401, %s410
          %s412 = smul.addr %s24, 2
          %s413 = sadd.s32 %s408, %s412
          %s414 = smul.addr %s23, 2
          %s415 = sadd.s32 %s413, %s414
          %s416 = smul.addr %s415, 128
          %s417 = scalar_lea.hbm %s3, %s416
          %s419 = sshll.u32 %s404, 4
          %s420 = int_to_ptr.vmem [resolvable:$true] %s419
          %422 = dma.vmem_to_hbm [thread:$0]  %s420, 256, %s417, %s401
        $region44: #{tpu_custom_call.1} parent=31 // pred_fallthru
          _
      $region32: #{tpu_custom_call.1} parent=5 // pred_fallthru
        _
      %p423 = scmp.le.s32.totalorder 2, %s12
      // Predicated region
      $region45: #{tpu_custom_call.1} parent=5 // pred_check
        %p424 = pneg %p423
      $region46: #{tpu_custom_call.1} parent=5 // pred_check_branch
        %426 = sbr.rel (%p424) target = $region48
      $region47: #{tpu_custom_call.1} parent=5 // pred_region
        %s427 = ssub.s32 %s12, 2
        // Predicated region
        $region49: #{tpu_custom_call.1} parent=47 // pred_check
          %p428 = pneg %p155
        $region50: #{tpu_custom_call.1} parent=47 // pred_check_branch
          %430 = sbr.rel (%p428) target = $region52
        $region51: #{tpu_custom_call.1} parent=47 // pred_region
          %s431 = sand.u32 %s140, 1
          %s432 = scalar_lea.sflag [#allocation4], %s431
          %s433 = sand.u32 %s140, 1
          %s434 = smul.addr %s433, 16
          %s435 = scalar_lea.vmem [#allocation3], %s434
          %436 = dma.done %s432, 256
        $region52: #{tpu_custom_call.1} parent=47 // pred_fallthru
          _
      $region48: #{tpu_custom_call.1} parent=5 // pred_fallthru
        _
    $region6: #{tpu_custom_call.1} parent=1 // loop_footer
      %s16 = sadd.s32 1, %s12
    $region7: #{tpu_custom_call.1} parent=1 // loop_footer_branch
      %11 = sbr.rel target = $region3
    $region8: #{tpu_custom_call.1} parent=1 // loop_exit
      _
    %437 = vsyncpa [#allocation4], 1
    %s438 = scalar_lea.sflag [#allocation4], 1
    %439 = vsyncpa %s438, 1

</llo_original>
